<compile_context>
chip_gen: v5e
topology: v5e:2x2
jax: 0.10.0
libtpu: 0.0.40
codegen_flags: <defaults>
</compile_context>

<pallas_src>
import functools

import jax
import jax.numpy as jnp
from jax.experimental import pallas as pl
from jax.experimental.pallas import tpu as pltpu

_LANES = 128
_SUBLANES = 8
_VIRTUAL_COLS = 8 * _LANES                 # 1024-wide packed view (8 lane tiles)
_TARGET_BLOCK_BYTES = 2 * 1024 * 1024      # ~2 MiB of native-dtype data / input / step


def _loss_adv_g_kernel(*refs, n_rows, inv_n_total, needs_row_mask, has_rem):
    """Accumulate (x-1)^2 over packed row blocks of both tails; finalize mean."""
    if has_rem:
        dv_ref, di_ref, rdv_ref, rdi_ref, o_ref, acc_ref = refs
    else:
        dv_ref, di_ref, o_ref, acc_ref = refs
        rdv_ref = rdi_ref = None

    j = pl.program_id(0)
    last = pl.num_programs(0) - 1

    @pl.when(j == 0)
    def _init():
        acc_ref[...] = jnp.zeros_like(acc_ref)

    # Cast in-register (VPU) so the DMA moved native-width bytes.
    ev = dv_ref[...].astype(jnp.float32) - jnp.float32(1.0)
    ei = di_ref[...].astype(jnp.float32) - jnp.float32(1.0)
    sq = ev * ev + ei * ei                                   # (tr, cols)

    def _accumulate(vals):
        # Lane reduce on the XLU (idle otherwise); acc is (tr, 1) f32 -> the
        # per-step VMEM read-modify-write is a handful of vregs, not a block.
        acc_ref[...] += jnp.sum(vals, axis=-1, keepdims=True)

    if needs_row_mask:
        # Only the last row-block can be ragged; keep the mask off the hot path.
        @pl.when(j != last)
        def _hot():
            _accumulate(sq)

        @pl.when(j == last)
        def _edge():
            tr = dv_ref.shape[0]
            row = j * tr + jax.lax.broadcasted_iota(jnp.int32, sq.shape, 0)
            _accumulate(jnp.where(row < n_rows, sq, jnp.float32(0.0)))
    else:
        _accumulate(sq)

    @pl.when(j == last)
    def _finalize():
        total = jnp.sum(acc_ref[...])
        if has_rem:
            # Flat tail (< 1024 elements) that did not fit the packed view.
            rv = rdv_ref[...].astype(jnp.float32) - jnp.float32(1.0)
            ri = rdi_ref[...].astype(jnp.float32) - jnp.float32(1.0)
            total = total + jnp.sum(rv * rv + ri * ri)
        o_ref[0, 0] = total * jnp.float32(inv_n_total)


def loss_adv_g(dv: jax.Array, di: jax.Array, *,
               target_block_bytes: int = _TARGET_BLOCK_BYTES) -> jax.Array:
    """JAX/Pallas equivalent of LossAdvG.forward(dv, di)."""
    assert dv.shape == di.shape, (dv.shape, di.shape)
    assert dv.dtype == di.dtype, (dv.dtype, di.dtype)

    idx_m = dv.shape[0] // 2                 # int(len(dv) / 2)
    dv_t = jnp.reshape(dv[idx_m:], (-1,))    # second half of each batch, flattened
    di_t = jnp.reshape(di[idx_m:], (-1,))
    n = dv_t.shape[0]
    assert n > 0, "empty tail"
    n_total = 2 * n                          # elements of concat([dv_tail, di_tail])
    itemsize = dv.dtype.itemsize

    # Packed, sublane-dense 2-D view: (rows, 1024) with a small flat remainder.
    cols = _VIRTUAL_COLS if n >= _VIRTUAL_COLS else n
    rows = n // cols
    rem = n - rows * cols
    has_rem = rem > 0

    dv_main = dv_t[: rows * cols].reshape(rows, cols)
    di_main = di_t[: rows * cols].reshape(rows, cols)
    if has_rem:
        dv_rem = dv_t[rows * cols:].reshape(1, rem)
        di_rem = di_t[rows * cols:].reshape(1, rem)

    # Rows per block: ~target_block_bytes of native-dtype data per input per step.
    block_elems = max(1, target_block_bytes // itemsize)
    target_rows = max(_SUBLANES, (block_elems // cols) // _SUBLANES * _SUBLANES)
    if rows <= target_rows:
        tr = rows                            # full extent -> always a legal block
    else:
        tr = target_rows                     # multiple of 8
    grid_rows = pl.cdiv(rows, tr)
    needs_row_mask = (grid_rows * tr) != rows

    kernel = functools.partial(
        _loss_adv_g_kernel,
        n_rows=rows,
        inv_n_total=1.0 / float(n_total),
        needs_row_mask=needs_row_mask,
        has_rem=has_rem,
    )

    in_specs = [
        pl.BlockSpec((tr, cols), lambda i: (i, 0)),
        pl.BlockSpec((tr, cols), lambda i: (i, 0)),
    ]
    args = [dv_main, di_main]
    if has_rem:
        # Constant index_map -> DMA'd once, read only in the epilogue.
        in_specs += [
            pl.BlockSpec((1, rem), lambda i: (0, 0)),
            pl.BlockSpec((1, rem), lambda i: (0, 0)),
        ]
        args += [dv_rem, di_rem]

    cost = pl.CostEstimate(
        flops=int(6 * n),
        transcendentals=0,
        bytes_accessed=int(2 * n * itemsize + 4),
    )

    out = pl.pallas_call(
        kernel,
        out_shape=jax.ShapeDtypeStruct((1, 1), jnp.float32),
        grid_spec=pltpu.PrefetchScalarGridSpec(
            num_scalar_prefetch=0,
            grid=(grid_rows,),
            in_specs=in_specs,
            out_specs=pl.BlockSpec(memory_space=pltpu.MemorySpace.SMEM),
            scratch_shapes=[pltpu.VMEM((tr, 1), jnp.float32)],
        ),
        compiler_params=pltpu.CompilerParams(
            dimension_semantics=("arbitrary",),   # reduction axis -> serial
        ),
        cost_estimate=cost,
    )(*args)
    return out[0, 0]


if __name__ == "__main__":
    key = jax.random.PRNGKey(0)
    k1, k2, k3, k4 = jax.random.split(key, 4)

    def reference(dv, di):
        idx_m = dv.shape[0] // 2
        dvi = jnp.concatenate(
            [dv[idx_m:].astype(jnp.float32), di[idx_m:].astype(jnp.float32)], axis=0)
        return jnp.mean((dvi - 1.0) ** 2)

    # Primary: small discriminator-style maps (batch 4 -> tail batch 2).
    dv = jax.random.normal(k1, (4, 4, 16, 16), dtype=jnp.float32)
    di = jax.random.normal(k2, (4, 4, 16, 16), dtype=jnp.float32)
    loss = jax.block_until_ready(loss_adv_g(dv, di))
    ref = reference(dv, di)
    assert jnp.allclose(loss, ref, rtol=1e-4, atol=1e-5), (loss, ref)

    # Multi-step path: forced small blocks -> grid > 1, ragged last row block
    # (masked only on the last step) and a flat remainder handled in the epilogue.
    dvb = jax.random.normal(k3, (8, 2, 36, 36), dtype=jnp.float32)
    dib = jax.random.normal(k4, (8, 2, 36, 36), dtype=jnp.float32)
    loss_b = jax.block_until_ready(loss_adv_g(dvb, dib, target_block_bytes=32 * 1024))
    ref_b = reference(dvb, dib)
    assert jnp.allclose(loss_b, ref_b, rtol=1e-4, atol=1e-5), (loss_b, ref_b)

    # bf16 inputs: native-width DMA + in-register cast to f32 inside the kernel.
    dvc = dv.astype(jnp.bfloat16)
    dic = di.astype(jnp.bfloat16)
    loss_c = jax.block_until_ready(loss_adv_g(dvc, dic))
    ref_c = reference(dvc, dic)
    assert jnp.allclose(loss_c, ref_c, rtol=1e-3, atol=1e-3), (loss_c, ref_c)

    print("KERNEL_OK")
</pallas_src>

<mosaic_0001>
module attributes {stable_mosaic.version = 11 : i64} {
  func.func @_loss_adv_g_kernel(%arg0: i32, %arg1: memref<2x1024xf32, #tpu.memory_space<vmem>>, %arg2: memref<2x1024xf32, #tpu.memory_space<vmem>>, %arg3: memref<1x1xf32, #tpu.memory_space<smem>>, %arg4: memref<2x1xf32, #tpu.memory_space<vmem>>) attributes {dimension_semantics = [#tpu.dimension_semantics<arbitrary>], iteration_bounds = array<i64: 1>, scalar_prefetch = 0 : i64, scratch_operands = 1 : i64, tpu.core_type = #tpu.core_type<tc>, window_params = [{transform_indices = @transform_0, window_bounds = array<i64: 2, 1024>}, {transform_indices = @transform_1, window_bounds = array<i64: 2, 1024>}, {transform_indices = @transform_2, window_bounds = array<i64: 1, 1>}]} {
    %c0_i32 = arith.constant 0 : i32
    %0 = arith.cmpi eq, %arg0, %c0_i32 : i32
    %1 = arith.extui %0 : i1 to i32
    %c0_i32_0 = arith.constant 0 : i32
    %2 = arith.cmpi ne, %1, %c0_i32_0 : i32
    scf.if %2 {
      %cst_12 = arith.constant 0.000000e+00 : f32
      %20 = vector.broadcast %cst_12 : f32 to vector<2x1xf32>
      %c0_13 = arith.constant 0 : index
      %c0_14 = arith.constant 0 : index
      %21 = vector.load %arg4[%c0_13, %c0_14] : memref<2x1xf32, #tpu.memory_space<vmem>>, vector<2x1xf32>
      tpu.vector_store %arg4[%c0_13, %c0_14], %20 {strides = array<i32>} : memref<2x1xf32, #tpu.memory_space<vmem>>, vector<2x1xf32>,
    } else {
    }
    %c0 = arith.constant 0 : index
    %c0_1 = arith.constant 0 : index
    %3 = vector.load %arg1[%c0, %c0_1] : memref<2x1024xf32, #tpu.memory_space<vmem>>, vector<2x1024xf32>
    %cst = arith.constant 1.000000e+00 : f32
    %4 = vector.broadcast %cst : f32 to vector<2x1024xf32>
    %5 = arith.subf %3, %4 : vector<2x1024xf32>
    %c0_2 = arith.constant 0 : index
    %c0_3 = arith.constant 0 : index
    %6 = vector.load %arg2[%c0_2, %c0_3] : memref<2x1024xf32, #tpu.memory_space<vmem>>, vector<2x1024xf32>
    %cst_4 = arith.constant 1.000000e+00 : f32
    %7 = vector.broadcast %cst_4 : f32 to vector<2x1024xf32>
    %8 = arith.subf %6, %7 : vector<2x1024xf32>
    %9 = arith.mulf %5, %5 : vector<2x1024xf32>
    %10 = arith.mulf %8, %8 : vector<2x1024xf32>
    %11 = arith.addf %9, %10 : vector<2x1024xf32>
    %c0_5 = arith.constant 0 : index
    %c0_6 = arith.constant 0 : index
    %12 = vector.load %arg4[%c0_5, %c0_6] : memref<2x1xf32, #tpu.memory_space<vmem>>, vector<2x1xf32>
    %cst_7 = arith.constant dense<0.000000e+00> : vector<2xf32>
    %13 = vector.multi_reduction <add>, %11, %cst_7 [1] : vector<2x1024xf32> to vector<2xf32>
    %14 = vector.shape_cast %13 : vector<2xf32> to vector<2x1xf32>
    %15 = arith.addf %12, %14 : vector<2x1xf32>
    %c0_8 = arith.constant 0 : index
    %c0_9 = arith.constant 0 : index
    %16 = vector.load %arg4[%c0_8, %c0_9] : memref<2x1xf32, #tpu.memory_space<vmem>>, vector<2x1xf32>
    tpu.vector_store %arg4[%c0_8, %c0_9], %15 {strides = array<i32>} : memref<2x1xf32, #tpu.memory_space<vmem>>, vector<2x1xf32>,
    %c0_i32_10 = arith.constant 0 : i32
    %17 = arith.cmpi eq, %arg0, %c0_i32_10 : i32
    %18 = arith.extui %17 : i1 to i32
    %c0_i32_11 = arith.constant 0 : i32
    %19 = arith.cmpi ne, %18, %c0_i32_11 : i32
    scf.if %19 {
      %c0_12 = arith.constant 0 : index
      %c0_13 = arith.constant 0 : index
      %20 = vector.load %arg4[%c0_12, %c0_13] : memref<2x1xf32, #tpu.memory_space<vmem>>, vector<2x1xf32>
      %21 = vector.shape_cast %20 : vector<2x1xf32> to vector<1x2x1xf32>
      %cst_14 = arith.constant dense<0.000000e+00> : vector<1xf32>
      %22 = vector.multi_reduction <add>, %21, %cst_14 [1, 2] : vector<1x2x1xf32> to vector<1xf32>
      %23 = vector.shape_cast %22 : vector<1xf32> to vector<1x1x1xf32>
      %24 = vector.extract %23[0, 0, 0] : f32 from vector<1x1x1xf32>
      %cst_15 = arith.constant 2.44140625E-4 : f32
      %25 = arith.mulf %24, %cst_15 : f32
      %c0_16 = arith.constant 0 : index
      %c0_17 = arith.constant 0 : index
      %26 = memref.load %arg3[%c0_16, %c0_17] : memref<1x1xf32, #tpu.memory_space<smem>>
      memref.store %25, %arg3[%c0_16, %c0_17] : memref<1x1xf32, #tpu.memory_space<smem>>
    } else {
    }
    return
  }
  func.func @transform_0(%arg0: i32) -> (i32, i32) {
    %c0_i32 = arith.constant 0 : i32
    %c0_i32_0 = arith.constant 0 : i32
    return %arg0, %c0_i32 : i32, i32
  }
  func.func @transform_1(%arg0: i32) -> (i32, i32) {
    %c0_i32 = arith.constant 0 : i32
    %c0_i32_0 = arith.constant 0 : i32
    return %arg0, %c0_i32 : i32, i32
  }
  func.func @transform_2(%arg0: i32) -> (i32, i32) {
    %c0_i32 = arith.constant 0 : i32
    %c0_i32_0 = arith.constant 0 : i32
    %c0_i32_1 = arith.constant 0 : i32
    return %c0_i32, %c0_i32_0 : i32, i32
  }
}

</mosaic_0001>

<llo_original>
// kernel: tpu_custom_call.1
$region0: #{tpu_custom_call.1}
  #allocation0 [shape = 'u32[]', space=smem, size = 0x4, offset = 0x4, fixed_abs, tag = 'smem constant byte address 0x4 - core index']
  #allocation1 [shape = 'u32[72,128]{1,0:T(1,128)}', space=vmem, size = 0x9000, scoped, tag = 'internal scratch']
  #allocation2 [shape = 'f32[2,1]{1,0:T(2,128)}', space=vmem, size = 0x400, scoped, tag = 'scratch operand']
  %s0 = inlined_call_operand.hbm [shape: f32[2,1024], index: 0, kind: input, shape index: {}]
  %s1 = inlined_call_operand.hbm [shape: f32[2,1024], index: 1, kind: input, shape index: {}]
  %s2 = inlined_call_operand.hbm [shape: f32[1,1], index: 2, kind: output, shape index: {}]
  %s3 = sld [smem:[#allocation0]]
  $region34: #{tpu_custom_call.1} parent=0
    _
  %s5 = ssub.s32 1, %s3
  %s6 = scalar_select 0, %s5, %s3
  $region1: #{tpu_custom_call.1} parent=0
    #allocation3 [shape = 'u8[8192]{0}', space=vmem, size = 0x2000, scoped, tag = 'input window, operand 0, single buffered']
    #allocation4 [shape = 's32[1]{0}', space=sflag, size = 0x4, scoped, tag = 'scoped memory for tpu_custom_call.1']
    #allocation5 [shape = 's32[1]{0}', space=sflag, size = 0x4, scoped, tag = 'scoped memory for tpu_custom_call.1']
    #allocation6 [shape = 'u8[8192]{0}', space=vmem, size = 0x2000, scoped, tag = 'input window, operand 1, single buffered']
    #allocation7 [shape = 's32[1]{0}', space=sflag, size = 0x4, scoped, tag = 'scoped memory for tpu_custom_call.1']
    #allocation8 [shape = 'u8[512]{0}', space=smem, size = 0x200, scoped, tag = 'output window, operand 0, single buffered']
    %7 = vsyncpa [#allocation4], 0
    %8 = vsyncpa [#allocation7], 0
    %9 = vsyncpa [#allocation5], 0
    // Predicated region
    $region2: #{tpu_custom_call.1} parent=1 // pred_check
      _
    $region3: #{tpu_custom_call.1} parent=1 // pred_check_branch
      %11 = sbr.rel (0) target = $region5
    $region4: #{tpu_custom_call.1} parent=1 // pred_region
      %13 = vsyncadd [#allocation4], 0
      %s15 = sshll.u32 %s0, 4
      %s16 = int_to_ptr.hbm [resolvable:$true] %s15
      %s17 = sshll.u32 [#allocation3], 4
      %s18 = int_to_ptr.vmem [resolvable:$true] %s17
      %20 = dma.hbm_to_vmem [thread:$0]  %s16, 256, %s18, [#allocation4]
    $region5: #{tpu_custom_call.1} parent=1 // pred_fallthru
      _
    // Predicated region
    $region6: #{tpu_custom_call.1} parent=1 // pred_check
      _
    $region7: #{tpu_custom_call.1} parent=1 // pred_check_branch
      %22 = sbr.rel (0) target = $region9
    $region8: #{tpu_custom_call.1} parent=1 // pred_region
      %24 = vsyncadd [#allocation7], 0
      %s26 = sshll.u32 %s1, 4
      %s27 = int_to_ptr.hbm [resolvable:$true] %s26
      %s28 = sshll.u32 [#allocation6], 4
      %s29 = int_to_ptr.vmem [resolvable:$true] %s28
      %31 = dma.hbm_to_vmem [thread:$0]  %s27, 256, %s29, [#allocation7]
    $region9: #{tpu_custom_call.1} parent=1 // pred_fallthru
      _
    // Predicated region
    $region10: #{tpu_custom_call.1} parent=1 // pred_check
      _
    $region11: #{tpu_custom_call.1} parent=1 // pred_check_branch
      %33 = sbr.rel (0) target = $region13
    $region12: #{tpu_custom_call.1} parent=1 // pred_region
      %35 = dma.done [#allocation4], 256
    $region13: #{tpu_custom_call.1} parent=1 // pred_fallthru
      _
    // Predicated region
    $region14: #{tpu_custom_call.1} parent=1 // pred_check
      _
    $region15: #{tpu_custom_call.1} parent=1 // pred_check_branch
      %37 = sbr.rel (0) target = $region17
    $region16: #{tpu_custom_call.1} parent=1 // pred_region
      %39 = dma.done [#allocation7], 256
    $region17: #{tpu_custom_call.1} parent=1 // pred_fallthru
      _
    %p40 = scmp.eq.s32.totalorder 0, 0
    // Predicated region
    $region18: #{tpu_custom_call.1} parent=1 // pred_check
      %p41 = pneg %p40
    $region19: #{tpu_custom_call.1} parent=1 // pred_check_branch
      %43 = sbr.rel (%p41) target = $region21
    $region20: #{tpu_custom_call.1} parent=1 // pred_region
      %vm44 = vcmask 1024
      %45 = vst.msk [vmem:[#allocation2] sm:$0x3] %vm44, 0.0
    $region21: #{tpu_custom_call.1} parent=1 // pred_fallthru
      _
    %v46 = vld [vmem:[#allocation3] sm:$0xff]
    %v47 = vld [vmem:[#allocation3 + $0x8] sm:$0xff]
    %v48 = vsub.f32 %v46, 1.0
    %v49 = vsub.f32 %v47, 1.0
    %v50 = vld [vmem:[#allocation6] sm:$0xff]
    %v51 = vld [vmem:[#allocation6 + $0x8] sm:$0xff]
    %v52 = vsub.f32 %v50, 1.0
    %v53 = vsub.f32 %v51, 1.0
    %v54 = vmul.f32 %v48, %v48
    %v55 = vmul.f32 %v49, %v49
    %v56 = vmul.f32 %v52, %v52
    %v57 = vmul.f32 %v53, %v53
    %v58 = vadd.f32 %v54, %v56
    %v59 = vadd.f32 %v55, %v57
    %v60 = vld [vmem:[#allocation2] sm:$0x3]
    %63 = vst [vmem:[#allocation1] ss:$4 sm:$0xff] %v58
    %s64 = scalar_lea.vmem [#allocation1], 32
    %65 = vst [vmem:[%s64] ss:$4 sm:$0xff] %v59
    %v66 = vld.sshfl [vmem:[#allocation1] sm:$0xff pattern:$0x73625140]
    %v67 = vld.sshfl [vmem:[#allocation1 + $0x8] sm:$0xff pattern:$0x73625140]
    %v68 = vld.sshfl [vmem:[#allocation1 + $0x10] sm:$0xff pattern:$0x73625140]
    %v69 = vld.sshfl [vmem:[#allocation1 + $0x18] sm:$0xff pattern:$0x73625140]
    %v70 = vld.sshfl [vmem:[#allocation1 + $0x20] sm:$0xff pattern:$0x73625140]
    %v71 = vld.sshfl [vmem:[#allocation1 + $0x28] sm:$0xff pattern:$0x73625140]
    %v72 = vld.sshfl [vmem:[#allocation1 + $0x30] sm:$0xff pattern:$0x73625140]
    %v73 = vld.sshfl [vmem:[#allocation1 + $0x38] sm:$0xff pattern:$0x73625140]
    %vm82 = vcmask 1041408
    %v83 = vsel %vm82, %v66, 0.0
    %v84 = vsel %vm82, %v67, 0.0
    %v85 = vadd.f32 %v83, %v84
    %v86 = vsel %vm82, %v68, 0.0
    %v87 = vadd.f32 %v85, %v86
    %v88 = vsel %vm82, %v69, 0.0
    %v89 = vadd.f32 %v87, %v88
    %v90 = vsel %vm82, %v70, 0.0
    %v91 = vadd.f32 %v89, %v90
    %v92 = vsel %vm82, %v71, 0.0
    %v93 = vadd.f32 %v91, %v92
    %v94 = vsel %vm82, %v72, 0.0
    %v95 = vadd.f32 %v93, %v94
    %v96 = vsel %vm82, %v73, 0.0
    %v97 = vadd.f32 %v95, %v96
    %98 = vadd.xlane.f32.xlu0 %v97
    %v99 = vpop.xlane.xlu0 %98
    %v100 = vadd.f32 %v60, %v99
    %vm101 = vcmask 1024
    %102 = vst.msk [vmem:[#allocation2] sm:$0x3] %vm101, %v100
    // Predicated region
    $region22: #{tpu_custom_call.1} parent=1 // pred_check
      %p103 = pneg %p40
    $region23: #{tpu_custom_call.1} parent=1 // pred_check_branch
      %105 = sbr.rel (%p103) target = $region25
    $region24: #{tpu_custom_call.1} parent=1 // pred_region
      %v106 = vld [vmem:[#allocation2] sm:$0x3]
      %v107 = vsel %vm101, %v106, 0.0
      %108 = vadd.xlane.f32.xlu0 %v107
      %v109 = vpop.xlane.xlu0 %108
      %v110 = vrot.slane %v109, 4
      %v111 = vadd.f32 %v109, %v110
      %v112 = vrot.slane %v111, 2
      %v113 = vadd.f32 %v111, %v112
      %v114 = vrot.slane %v113, 1
      %v115 = vadd.f32 %v113, %v114
      %s116 = vtos %v115
      %s117 = smul.f32 %s116, 0.00024414063
      %s118 = scalar_lea.smem [#allocation8], 0
      %119 = sst [smem:[%s118]] %s117
    $region25: #{tpu_custom_call.1} parent=1 // pred_fallthru
      _
    // Predicated region
    $region26: #{tpu_custom_call.1} parent=1 // pred_check
      _
    $region27: #{tpu_custom_call.1} parent=1 // pred_check_branch
      %121 = sbr.rel (0) target = $region29
    $region28: #{tpu_custom_call.1} parent=1 // pred_region
      %123 = vsyncadd [#allocation5], 0
      %s125 = sshll.u32 %s2, 4
      %s126 = int_to_ptr.hbm [resolvable:$true] %s125
      %128 = dma.smem_to_hbm [#allocation8], 16, %s126, [#allocation5]
    $region29: #{tpu_custom_call.1} parent=1 // pred_fallthru
      _
    // Predicated region
    $region30: #{tpu_custom_call.1} parent=1 // pred_check
      _
    $region31: #{tpu_custom_call.1} parent=1 // pred_check_branch
      %130 = sbr.rel (0) target = $region33
    $region32: #{tpu_custom_call.1} parent=1 // pred_region
      %132 = dma.done [#allocation5], 16
    $region33: #{tpu_custom_call.1} parent=1 // pred_fallthru
      _
    %133 = sfence
    %134 = vsyncpa [#allocation4], 1
    %135 = vsyncpa [#allocation7], 1
    %136 = vsyncpa [#allocation5], 1

</llo_original>
